<compile_context>
chip_gen: v7x
topology: tpu7x:2x2x1
jax: 0.10.0
libtpu: 0.0.40
codegen_flags: <defaults>
</compile_context>

<pallas_src>
import functools

import jax
import jax.numpy as jnp
from jax import lax
from jax.experimental import pallas as pl
from jax.experimental.pallas import tpu as pltpu

POOL = 7  # compute_block_mask(mask, 7) is hardcoded in BlockDrop.forward (odd -> no crop)


# ------------------------- kernel 1: scaled block mask -------------------------

def _blockmask_kernel(mask_ref, bms_ref, *, width):
    """(B, H*W) {0,1} mask -> (1 - maxpool7x7(mask)) * numel / sum, fully in VMEM.

    Separable 7x7 / stride-1 / pad-3 max pool on the flat (B, H*W) slab:
      * H direction: flat shifts of +-k*W (same column; zero fill at the image
        top/bottom -- zero pad == -inf pad for a {0,1} mask because every window
        contains its in-range centre pixel).
      * W direction: flat shifts of +-k with a lane-iota validity mask so a
        shifted read never leaks into the neighbouring image row.
    """
    B, HW = mask_ref.shape
    W = width
    half = POOL // 2
    m = mask_ref[...]

    def shift(a, s):
        # result[:, i] = a[:, i + s], zero where i + s is out of range.
        if s == 0:
            return a
        z = jnp.zeros((B, abs(s)), a.dtype)
        if s > 0:
            return jnp.concatenate([a[:, s:], z], axis=1)
        return jnp.concatenate([z, a[:, :s]], axis=1)

    # Rows (H direction): shifts are whole multiples of W -> no cross-row leakage.
    ph = m
    for k in range(1, half + 1):
        ph = jnp.maximum(ph, shift(m, k * W))
        ph = jnp.maximum(ph, shift(m, -k * W))

    # Columns (W direction).
    lane = lax.broadcasted_iota(jnp.int32, (B, HW), 1)
    col = (lane & (W - 1)) if (W & (W - 1)) == 0 else (lane % W)
    pooled = ph
    for s in range(-half, half + 1):
        if s == 0:
            continue
        valid = (col + s >= 0) & (col + s < W)
        pooled = jnp.maximum(pooled, jnp.where(valid, shift(ph, s), 0.0))

    block_mask = 1.0 - pooled                                  # (B, HW)
    # Renormalisation folded into the mask (torch: out * numel / sum; same
    # divide-by-zero hazard as torch if literally every pixel were dropped).
    scale = jnp.float32(B * HW) / jnp.sum(block_mask)
    bms_ref[...] = block_mask * scale


# ------------------------- kernel 2: streamed apply ---------------------------

def _apply_kernel(bm_ref, x_ref, out_ref):
    # bm_ref : (1, 1, HW) f32   (scaled block mask for this batch row, scale folded in)
    # x_ref / out_ref : (1, TC, HW) in x.dtype
    x = x_ref[...].astype(jnp.float32)        # f32 VPU math (v5e has no bf16 VALU)
    out_ref[...] = (x * bm_ref[...]).astype(out_ref.dtype)


# --------------------------------- wrapper -------------------------------------

def _choose_tile_c(C, HW, itemsize, budget_bytes=8 << 20):
    """Largest channel tile such that double-buffered x+out tiles fit the budget."""
    max_tc = max(1, budget_bytes // (4 * HW * itemsize))   # 2 buffers * (in + out)
    if max_tc >= C:
        return C                       # full dim -> no sublane-divisibility constraint
    return max(8, (max_tc // 8) * 8)   # otherwise keep sublane-aligned multiples of 8


def blockdrop_forward(x, key, drop_p=0.5, block_size=7):
    """BlockDrop.forward.  x: (B, C, H, W); key: jax PRNG key.

    Returns (out, mask).  The torch module only returns `out`; the Bernoulli pixel
    mask is exposed so the deterministic tail can be validated against pure JAX.
    """
    B, C, H, W = x.shape
    HW = H * W
    gamma = drop_p / float(block_size) ** 2

    # Per-pixel Bernoulli(gamma) mask, shared across channels (== torch.rand < gamma).
    mask = (jax.random.uniform(key, (B, H, W)) < gamma).astype(jnp.float32)

    # Kernel 1: scaled block mask (tiny: B*HW elements, one grid step).
    bm_scaled = pl.pallas_call(
        functools.partial(_blockmask_kernel, width=W),
        out_shape=jax.ShapeDtypeStruct((B, HW), jnp.float32),
        grid=(1,),
        in_specs=[pl.BlockSpec((B, HW), lambda i: (0, 0))],
        out_specs=pl.BlockSpec((B, HW), lambda i: (0, 0)),
    )(mask.reshape(B, HW))

    # Kernel 2: stream x over (B, C-tiles); bm block revisited across C steps.
    x2 = x.reshape(B, C, HW)                  # contiguous reshape, keeps x.dtype
    itemsize = jnp.dtype(x.dtype).itemsize
    tile_c = _choose_tile_c(C, HW, itemsize)
    bytes_accessed = 2 * B * C * HW * itemsize + B * HW * 4
    out = pl.pallas_call(
        _apply_kernel,
        out_shape=jax.ShapeDtypeStruct((B, C, HW), x.dtype),
        grid=(B, pl.cdiv(C, tile_c)),
        in_specs=[
            pl.BlockSpec((1, 1, HW), lambda b, c: (b, 0, 0)),        # bm_scaled
            pl.BlockSpec((1, tile_c, HW), lambda b, c: (b, c, 0)),   # x
        ],
        out_specs=pl.BlockSpec((1, tile_c, HW), lambda b, c: (b, c, 0)),
        compiler_params=pltpu.CompilerParams(
            dimension_semantics=("parallel", "parallel"),   # megacore shard on v7x
            vmem_limit_bytes=32 << 20),
        cost_estimate=pl.CostEstimate(
            flops=B * C * HW, transcendentals=0, bytes_accessed=bytes_accessed),
    )(bm_scaled.reshape(B, 1, HW), x2)

    return out.reshape(B, C, H, W), mask


# ----------------------------------- main ---------------------------------------

if __name__ == "__main__":
    key = jax.random.PRNGKey(0)
    kx, km = jax.random.split(key)
    x = jax.random.normal(kx, (2, 4, 16, 16), jnp.float32)

    fwd = jax.jit(blockdrop_forward)
    out, mask = jax.block_until_ready(fwd(x, km))

    # Self-check: recompute everything downstream of the random draw in pure JAX
    # from the same Bernoulli mask (the RNG stream itself cannot match torch.rand,
    # but the Bernoulli(gamma) distribution and all downstream math do).
    pooled = lax.reduce_window(
        mask, -jnp.inf, lax.max,
        window_dimensions=(1, POOL, POOL),
        window_strides=(1, 1, 1),
        padding=((0, 0), (POOL // 2, POOL // 2), (POOL // 2, POOL // 2)))
    block_mask = 1.0 - pooled
    ref_out = x * block_mask[:, None, :, :] * (block_mask.size / jnp.sum(block_mask))

    assert out.shape == x.shape == (2, 4, 16, 16)
    assert out.dtype == x.dtype
    assert bool(jnp.all((mask == 0.0) | (mask == 1.0))), "mask is not binary"
    err = float(jnp.max(jnp.abs(out - ref_out)))
    if err > 1e-4:
        raise AssertionError(f"output mismatch, max abs err = {err}")

    print("KERNEL_OK")
</pallas_src>

<mosaic_0001>
module attributes {stable_mosaic.version = 11 : i64} {
  func.func @_apply_kernel(%arg0: i32, %arg1: i32, %arg2: memref<1x1x256xf32, #tpu.memory_space<vmem>>, %arg3: memref<1x4x256xf32, #tpu.memory_space<vmem>>, %arg4: memref<1x4x256xf32, #tpu.memory_space<vmem>>) attributes {dimension_semantics = [#tpu.dimension_semantics<parallel>, #tpu.dimension_semantics<parallel>], iteration_bounds = array<i64: 2, 1>, scalar_prefetch = 0 : i64, scratch_operands = 0 : i64, tpu.core_type = #tpu.core_type<tc>, window_params = [{transform_indices = @transform_0, window_bounds = array<i64: 1, 1, 256>}, {transform_indices = @transform_1, window_bounds = array<i64: 1, 4, 256>}, {transform_indices = @transform_2, window_bounds = array<i64: 1, 4, 256>}]} {
    %c0 = arith.constant 0 : index
    %c0_0 = arith.constant 0 : index
    %c0_1 = arith.constant 0 : index
    %0 = vector.load %arg3[%c0, %c0_0, %c0_1] : memref<1x4x256xf32, #tpu.memory_space<vmem>>, vector<1x4x256xf32>
    %c0_2 = arith.constant 0 : index
    %c0_3 = arith.constant 0 : index
    %c0_4 = arith.constant 0 : index
    %1 = vector.load %arg2[%c0_2, %c0_3, %c0_4] : memref<1x1x256xf32, #tpu.memory_space<vmem>>, vector<1x1x256xf32>
    %2 = vector.broadcast %1 : vector<1x1x256xf32> to vector<1x4x256xf32>
    %3 = arith.mulf %0, %2 : vector<1x4x256xf32>
    %c0_5 = arith.constant 0 : index
    %c0_6 = arith.constant 0 : index
    %c0_7 = arith.constant 0 : index
    %4 = vector.load %arg4[%c0_5, %c0_6, %c0_7] : memref<1x4x256xf32, #tpu.memory_space<vmem>>, vector<1x4x256xf32>
    tpu.vector_store %arg4[%c0_5, %c0_6, %c0_7], %3 {strides = array<i32>} : memref<1x4x256xf32, #tpu.memory_space<vmem>>, vector<1x4x256xf32>,
    return
  }
  func.func @transform_0(%arg0: i32, %arg1: i32) -> (i32, i32, i32) {
    %c0_i32 = arith.constant 0 : i32
    %c0_i32_0 = arith.constant 0 : i32
    %c0_i32_1 = arith.constant 0 : i32
    return %arg0, %c0_i32, %c0_i32_0 : i32, i32, i32
  }
  func.func @transform_1(%arg0: i32, %arg1: i32) -> (i32, i32, i32) {
    %c0_i32 = arith.constant 0 : i32
    %c0_i32_0 = arith.constant 0 : i32
    return %arg0, %arg1, %c0_i32 : i32, i32, i32
  }
  func.func @transform_2(%arg0: i32, %arg1: i32) -> (i32, i32, i32) {
    %c0_i32 = arith.constant 0 : i32
    %c0_i32_0 = arith.constant 0 : i32
    return %arg0, %arg1, %c0_i32 : i32, i32, i32
  }
}

module attributes {stable_mosaic.version = 11 : i64} {
  func.func @_blockmask_kernel(%arg0: i32, %arg1: memref<2x256xf32, #tpu.memory_space<vmem>>, %arg2: memref<2x256xf32, #tpu.memory_space<vmem>>) attributes {dimension_semantics = [#tpu.dimension_semantics<arbitrary>], iteration_bounds = array<i64: 1>, scalar_prefetch = 0 : i64, scratch_operands = 0 : i64, tpu.core_type = #tpu.core_type<tc>, window_params = [{pipeline_mode = #tpu.pipeline_mode<synchronous>, transform_indices = @transform_0, window_bounds = array<i64: 2, 256>}, {pipeline_mode = #tpu.pipeline_mode<synchronous>, transform_indices = @transform_1, window_bounds = array<i64: 2, 256>}]} {
    %c0 = arith.constant 0 : index
    %c0_0 = arith.constant 0 : index
    %0 = vector.load %arg1[%c0, %c0_0] : memref<2x256xf32, #tpu.memory_space<vmem>>, vector<2x256xf32>
    %cst = arith.constant 0.000000e+00 : f32
    %1 = vector.broadcast %cst : f32 to vector<2x16xf32>
    %2 = vector.extract_strided_slice %0 {offsets = [0, 16], sizes = [2, 240], strides = [1, 1]} : vector<2x256xf32> to vector<2x240xf32>
    %3 = tpu.concatenate %2, %1 in 1 : vector<2x240xf32>, vector<2x16xf32> -> vector<2x256xf32>
    %4 = arith.maximumf %0, %3 : vector<2x256xf32>
    %cst_1 = arith.constant 0.000000e+00 : f32
    %5 = vector.broadcast %cst_1 : f32 to vector<2x16xf32>
    %6 = vector.extract_strided_slice %0 {offsets = [0, 0], sizes = [2, 240], strides = [1, 1]} : vector<2x256xf32> to vector<2x240xf32>
    %7 = tpu.concatenate %5, %6 in 1 : vector<2x16xf32>, vector<2x240xf32> -> vector<2x256xf32>
    %8 = arith.maximumf %4, %7 : vector<2x256xf32>
    %cst_2 = arith.constant 0.000000e+00 : f32
    %9 = vector.broadcast %cst_2 : f32 to vector<2x32xf32>
    %10 = vector.extract_strided_slice %0 {offsets = [0, 32], sizes = [2, 224], strides = [1, 1]} : vector<2x256xf32> to vector<2x224xf32>
    %11 = tpu.concatenate %10, %9 in 1 : vector<2x224xf32>, vector<2x32xf32> -> vector<2x256xf32>
    %12 = arith.maximumf %8, %11 : vector<2x256xf32>
    %cst_3 = arith.constant 0.000000e+00 : f32
    %13 = vector.broadcast %cst_3 : f32 to vector<2x32xf32>
    %14 = vector.extract_strided_slice %0 {offsets = [0, 0], sizes = [2, 224], strides = [1, 1]} : vector<2x256xf32> to vector<2x224xf32>
    %15 = tpu.concatenate %13, %14 in 1 : vector<2x32xf32>, vector<2x224xf32> -> vector<2x256xf32>
    %16 = arith.maximumf %12, %15 : vector<2x256xf32>
    %cst_4 = arith.constant 0.000000e+00 : f32
    %17 = vector.broadcast %cst_4 : f32 to vector<2x48xf32>
    %18 = vector.extract_strided_slice %0 {offsets = [0, 48], sizes = [2, 208], strides = [1, 1]} : vector<2x256xf32> to vector<2x208xf32>
    %19 = tpu.concatenate %18, %17 in 1 : vector<2x208xf32>, vector<2x48xf32> -> vector<2x256xf32>
    %20 = arith.maximumf %16, %19 : vector<2x256xf32>
    %cst_5 = arith.constant 0.000000e+00 : f32
    %21 = vector.broadcast %cst_5 : f32 to vector<2x48xf32>
    %22 = vector.extract_strided_slice %0 {offsets = [0, 0], sizes = [2, 208], strides = [1, 1]} : vector<2x256xf32> to vector<2x208xf32>
    %23 = tpu.concatenate %21, %22 in 1 : vector<2x48xf32>, vector<2x208xf32> -> vector<2x256xf32>
    %24 = arith.maximumf %20, %23 : vector<2x256xf32>
    %25 = tpu.iota {dimensions = array<i32: 1>} : vector<2x256xi32>
    %c15_i32 = arith.constant 15 : i32
    %26 = vector.broadcast %c15_i32 : i32 to vector<2x256xi32>
    %27 = arith.andi %25, %26 : vector<2x256xi32>
    %c-3_i32 = arith.constant -3 : i32
    %28 = vector.broadcast %c-3_i32 : i32 to vector<2x256xi32>
    %29 = arith.addi %27, %28 : vector<2x256xi32>
    %c0_i32 = arith.constant 0 : i32
    %30 = vector.broadcast %c0_i32 : i32 to vector<2x256xi32>
    %31 = arith.cmpi sge, %29, %30 : vector<2x256xi32>
    %c-3_i32_6 = arith.constant -3 : i32
    %32 = vector.broadcast %c-3_i32_6 : i32 to vector<2x256xi32>
    %33 = arith.addi %27, %32 : vector<2x256xi32>
    %c16_i32 = arith.constant 16 : i32
    %34 = vector.broadcast %c16_i32 : i32 to vector<2x256xi32>
    %35 = arith.cmpi slt, %33, %34 : vector<2x256xi32>
    %36 = arith.andi %31, %35 : vector<2x256xi1>
    %cst_7 = arith.constant 0.000000e+00 : f32
    %37 = vector.broadcast %cst_7 : f32 to vector<2x3xf32>
    %38 = vector.extract_strided_slice %24 {offsets = [0, 0], sizes = [2, 253], strides = [1, 1]} : vector<2x256xf32> to vector<2x253xf32>
    %39 = tpu.concatenate %37, %38 in 1 : vector<2x3xf32>, vector<2x253xf32> -> vector<2x256xf32>
    %cst_8 = arith.constant 0.000000e+00 : f32
    %40 = vector.broadcast %cst_8 : f32 to vector<2x256xf32>
    %41 = arith.select %36, %39, %40 : vector<2x256xi1>, vector<2x256xf32>
    %42 = arith.maximumf %24, %41 : vector<2x256xf32>
    %c-2_i32 = arith.constant -2 : i32
    %43 = vector.broadcast %c-2_i32 : i32 to vector<2x256xi32>
    %44 = arith.addi %27, %43 : vector<2x256xi32>
    %c0_i32_9 = arith.constant 0 : i32
    %45 = vector.broadcast %c0_i32_9 : i32 to vector<2x256xi32>
    %46 = arith.cmpi sge, %44, %45 : vector<2x256xi32>
    %c-2_i32_10 = arith.constant -2 : i32
    %47 = vector.broadcast %c-2_i32_10 : i32 to vector<2x256xi32>
    %48 = arith.addi %27, %47 : vector<2x256xi32>
    %c16_i32_11 = arith.constant 16 : i32
    %49 = vector.broadcast %c16_i32_11 : i32 to vector<2x256xi32>
    %50 = arith.cmpi slt, %48, %49 : vector<2x256xi32>
    %51 = arith.andi %46, %50 : vector<2x256xi1>
    %cst_12 = arith.constant 0.000000e+00 : f32
    %52 = vector.broadcast %cst_12 : f32 to vector<2x2xf32>
    %53 = vector.extract_strided_slice %24 {offsets = [0, 0], sizes = [2, 254], strides = [1, 1]} : vector<2x256xf32> to vector<2x254xf32>
    %54 = tpu.concatenate %52, %53 in 1 : vector<2x2xf32>, vector<2x254xf32> -> vector<2x256xf32>
    %cst_13 = arith.constant 0.000000e+00 : f32
    %55 = vector.broadcast %cst_13 : f32 to vector<2x256xf32>
    %56 = arith.select %51, %54, %55 : vector<2x256xi1>, vector<2x256xf32>
    %57 = arith.maximumf %42, %56 : vector<2x256xf32>
    %c-1_i32 = arith.constant -1 : i32
    %58 = vector.broadcast %c-1_i32 : i32 to vector<2x256xi32>
    %59 = arith.addi %27, %58 : vector<2x256xi32>
    %c0_i32_14 = arith.constant 0 : i32
    %60 = vector.broadcast %c0_i32_14 : i32 to vector<2x256xi32>
    %61 = arith.cmpi sge, %59, %60 : vector<2x256xi32>
    %c-1_i32_15 = arith.constant -1 : i32
    %62 = vector.broadcast %c-1_i32_15 : i32 to vector<2x256xi32>
    %63 = arith.addi %27, %62 : vector<2x256xi32>
    %c16_i32_16 = arith.constant 16 : i32
    %64 = vector.broadcast %c16_i32_16 : i32 to vector<2x256xi32>
    %65 = arith.cmpi slt, %63, %64 : vector<2x256xi32>
    %66 = arith.andi %61, %65 : vector<2x256xi1>
    %cst_17 = arith.constant 0.000000e+00 : f32
    %67 = vector.broadcast %cst_17 : f32 to vector<2x1xf32>
    %68 = vector.extract_strided_slice %24 {offsets = [0, 0], sizes = [2, 255], strides = [1, 1]} : vector<2x256xf32> to vector<2x255xf32>
    %69 = tpu.concatenate %67, %68 in 1 : vector<2x1xf32>, vector<2x255xf32> -> vector<2x256xf32>
    %cst_18 = arith.constant 0.000000e+00 : f32
    %70 = vector.broadcast %cst_18 : f32 to vector<2x256xf32>
    %71 = arith.select %66, %69, %70 : vector<2x256xi1>, vector<2x256xf32>
    %72 = arith.maximumf %57, %71 : vector<2x256xf32>
    %c1_i32 = arith.constant 1 : i32
    %73 = vector.broadcast %c1_i32 : i32 to vector<2x256xi32>
    %74 = arith.addi %27, %73 : vector<2x256xi32>
    %c0_i32_19 = arith.constant 0 : i32
    %75 = vector.broadcast %c0_i32_19 : i32 to vector<2x256xi32>
    %76 = arith.cmpi sge, %74, %75 : vector<2x256xi32>
    %c1_i32_20 = arith.constant 1 : i32
    %77 = vector.broadcast %c1_i32_20 : i32 to vector<2x256xi32>
    %78 = arith.addi %27, %77 : vector<2x256xi32>
    %c16_i32_21 = arith.constant 16 : i32
    %79 = vector.broadcast %c16_i32_21 : i32 to vector<2x256xi32>
    %80 = arith.cmpi slt, %78, %79 : vector<2x256xi32>
    %81 = arith.andi %76, %80 : vector<2x256xi1>
    %cst_22 = arith.constant 0.000000e+00 : f32
    %82 = vector.broadcast %cst_22 : f32 to vector<2x1xf32>
    %83 = vector.extract_strided_slice %24 {offsets = [0, 1], sizes = [2, 255], strides = [1, 1]} : vector<2x256xf32> to vector<2x255xf32>
    %84 = tpu.concatenate %83, %82 in 1 : vector<2x255xf32>, vector<2x1xf32> -> vector<2x256xf32>
    %cst_23 = arith.constant 0.000000e+00 : f32
    %85 = vector.broadcast %cst_23 : f32 to vector<2x256xf32>
    %86 = arith.select %81, %84, %85 : vector<2x256xi1>, vector<2x256xf32>
    %87 = arith.maximumf %72, %86 : vector<2x256xf32>
    %c2_i32 = arith.constant 2 : i32
    %88 = vector.broadcast %c2_i32 : i32 to vector<2x256xi32>
    %89 = arith.addi %27, %88 : vector<2x256xi32>
    %c0_i32_24 = arith.constant 0 : i32
    %90 = vector.broadcast %c0_i32_24 : i32 to vector<2x256xi32>
    %91 = arith.cmpi sge, %89, %90 : vector<2x256xi32>
    %c2_i32_25 = arith.constant 2 : i32
    %92 = vector.broadcast %c2_i32_25 : i32 to vector<2x256xi32>
    %93 = arith.addi %27, %92 : vector<2x256xi32>
    %c16_i32_26 = arith.constant 16 : i32
    %94 = vector.broadcast %c16_i32_26 : i32 to vector<2x256xi32>
    %95 = arith.cmpi slt, %93, %94 : vector<2x256xi32>
    %96 = arith.andi %91, %95 : vector<2x256xi1>
    %cst_27 = arith.constant 0.000000e+00 : f32
    %97 = vector.broadcast %cst_27 : f32 to vector<2x2xf32>
    %98 = vector.extract_strided_slice %24 {offsets = [0, 2], sizes = [2, 254], strides = [1, 1]} : vector<2x256xf32> to vector<2x254xf32>
    %99 = tpu.concatenate %98, %97 in 1 : vector<2x254xf32>, vector<2x2xf32> -> vector<2x256xf32>
    %cst_28 = arith.constant 0.000000e+00 : f32
    %100 = vector.broadcast %cst_28 : f32 to vector<2x256xf32>
    %101 = arith.select %96, %99, %100 : vector<2x256xi1>, vector<2x256xf32>
    %102 = arith.maximumf %87, %101 : vector<2x256xf32>
    %c3_i32 = arith.constant 3 : i32
    %103 = vector.broadcast %c3_i32 : i32 to vector<2x256xi32>
    %104 = arith.addi %27, %103 : vector<2x256xi32>
    %c0_i32_29 = arith.constant 0 : i32
    %105 = vector.broadcast %c0_i32_29 : i32 to vector<2x256xi32>
    %106 = arith.cmpi sge, %104, %105 : vector<2x256xi32>
    %c3_i32_30 = arith.constant 3 : i32
    %107 = vector.broadcast %c3_i32_30 : i32 to vector<2x256xi32>
    %108 = arith.addi %27, %107 : vector<2x256xi32>
    %c16_i32_31 = arith.constant 16 : i32
    %109 = vector.broadcast %c16_i32_31 : i32 to vector<2x256xi32>
    %110 = arith.cmpi slt, %108, %109 : vector<2x256xi32>
    %111 = arith.andi %106, %110 : vector<2x256xi1>
    %cst_32 = arith.constant 0.000000e+00 : f32
    %112 = vector.broadcast %cst_32 : f32 to vector<2x3xf32>
    %113 = vector.extract_strided_slice %24 {offsets = [0, 3], sizes = [2, 253], strides = [1, 1]} : vector<2x256xf32> to vector<2x253xf32>
    %114 = tpu.concatenate %113, %112 in 1 : vector<2x253xf32>, vector<2x3xf32> -> vector<2x256xf32>
    %cst_33 = arith.constant 0.000000e+00 : f32
    %115 = vector.broadcast %cst_33 : f32 to vector<2x256xf32>
    %116 = arith.select %111, %114, %115 : vector<2x256xi1>, vector<2x256xf32>
    %117 = arith.maximumf %102, %116 : vector<2x256xf32>
    %cst_34 = arith.constant 1.000000e+00 : f32
    %118 = vector.broadcast %cst_34 : f32 to vector<2x256xf32>
    %119 = arith.subf %118, %117 : vector<2x256xf32>
    %120 = vector.shape_cast %119 : vector<2x256xf32> to vector<1x2x256xf32>
    %cst_35 = arith.constant dense<0.000000e+00> : vector<1xf32>
    %121 = vector.multi_reduction <add>, %120, %cst_35 [1, 2] : vector<1x2x256xf32> to vector<1xf32>
    %122 = vector.shape_cast %121 : vector<1xf32> to vector<1x1x1xf32>
    %123 = vector.extract %122[0, 0, 0] : f32 from vector<1x1x1xf32>
    %cst_36 = arith.constant 5.120000e+02 : f32
    %124 = arith.divf %cst_36, %123 : f32
    %125 = vector.broadcast %124 : f32 to vector<2x256xf32>
    %126 = arith.mulf %119, %125 : vector<2x256xf32>
    %c0_37 = arith.constant 0 : index
    %c0_38 = arith.constant 0 : index
    %127 = vector.load %arg2[%c0_37, %c0_38] : memref<2x256xf32, #tpu.memory_space<vmem>>, vector<2x256xf32>
    tpu.vector_store %arg2[%c0_37, %c0_38], %126 {strides = array<i32>} : memref<2x256xf32, #tpu.memory_space<vmem>>, vector<2x256xf32>,
    return
  }
  func.func @transform_0(%arg0: i32) -> (i32, i32) {
    %c0_i32 = arith.constant 0 : i32
    %c0_i32_0 = arith.constant 0 : i32
    %c0_i32_1 = arith.constant 0 : i32
    return %c0_i32, %c0_i32_0 : i32, i32
  }
  func.func @transform_1(%arg0: i32) -> (i32, i32) {
    %c0_i32 = arith.constant 0 : i32
    %c0_i32_0 = arith.constant 0 : i32
    %c0_i32_1 = arith.constant 0 : i32
    return %c0_i32, %c0_i32_0 : i32, i32
  }
}

</mosaic_0001>

<llo_original>
// kernel: blockdrop_forward.3
$region0: #{blockdrop_forward.3}
  #allocation0 [shape = 'u32[]', space=smem, size = 0x4, offset = 0x4, fixed_abs, tag = 'smem constant byte address 0x4 - core index']
  #allocation1 [shape = 'u32[144,128]{1,0:T(1,128)}', space=vmem, size = 0x12000, scoped, tag = 'internal scratch']
  %s0 = inlined_call_operand.vmem [shape: f32[2,1,256], index: 0, kind: input, shape index: {}]
  %s1 = inlined_call_operand.vmem [shape: f32[2,4,256], index: 1, kind: input, shape index: {}]
  %s2 = inlined_call_operand.vmem [shape: f32[2,4,256], index: 2, kind: output, shape index: {}]
  %s3 = sld [smem:[#allocation0]]
  $region41: #{blockdrop_forward.3} parent=0
    _
  %s5 = ssub.s32 1, %s3
  %s6 = scalar_select 0, %s5, %s3
  loop: start=0, step=1, limit=4
  $region2: #{blockdrop_forward.3} parent=0 // loop_pre_header
    _
  $region3: #{blockdrop_forward.3} parent=0 // loop_header
    %s8 = sphi 0, %s12
    %p9 = scmp.ge.s32.totalorder %s8, 4
    %s15 = sphi 0, %s27
    %s16 = sphi 0, %s23
    %s17 = sphi 0, %s15
    %s18 = sphi 0, %s16
    %s19 = sphi 0, %s17
    %s20 = sphi 0, %s18
    %s30 = sphi 0, %s32
    %s33 = sphi 0, %s30
    %s34 = sphi 0, %s33
    %s50 = sphi 0, %s34
    %s58 = sphi 0, %s60
    %s61 = sphi 0, %s58
    %s62 = sphi 0, %s61
    %s78 = sphi 0, %s62
    %s86 = sphi 0, %s88
    %s89 = sphi 0, %s86
    %s90 = sphi 0, %s89
    %s106 = sphi 0, %s90
  $region4: #{blockdrop_forward.3} parent=0 // loop_header_branch
    %11 = sbr.rel (%p9) target = $region8
  $region5: #{blockdrop_forward.3} parent=0 // loop_body
    %s13 = ssub.s32 %s8, 1
    %s14 = ssub.s32 %s8, 2
    %s21 = sadd.s32 1, %s16
    %p22 = scmp.ge.s32.totalorder %s21, 1
    %s23 = scalar_select %p22, 0, %s21
    %s24 = sadd.s32 1, %s15
    %s25 = scalar_select %p22, %s24, %s15
    %p26 = scmp.ge.s32.totalorder %s25, 2
    %s27 = scalar_select %p26, 0, %s25
    %s28 = ssub.s32 %s15, %s27
    %p29 = scmp.eq.s32.totalorder %s28, 0
    %s31 = sadd.s32 %s30, 1
    %s32 = scalar_select %p29, %s30, %s31
    %p35 = pneg %p29
    %p36 = scmp.eq.s32.totalorder %s8, 1
    %p37 = por %p35, %p36
    %p38 = scmp.ne.s32.totalorder %s30, %s33
    %p39 = scmp.eq.s32.totalorder %s8, 0
    %p40 = por %p38, %p39
    %p41 = scmp.ne.s32.totalorder %s30, %s33
    %p42 = scmp.eq.s32.totalorder %s13, 1
    %p43 = por %p41, %p42
    %p44 = scmp.ne.s32.totalorder %s33, %s34
    %p45 = scmp.eq.s32.totalorder %s13, 0
    %p46 = por %p44, %p45
    %p47 = scmp.ne.s32.totalorder %s33, %s34
    %p48 = scmp.eq.s32.totalorder %s14, 1
    %p49 = por %p47, %p48
    %p51 = scmp.ne.s32.totalorder %s34, %s50
    %p52 = scmp.eq.s32.totalorder %s14, 0
    %p53 = por %p51, %p52
    %s54 = ssub.s32 %s15, %s27
    %s55 = ssub.s32 %s16, %s23
    %s56 = sor.u32 %s54, %s55
    %p57 = scmp.eq.s32.totalorder %s56, 0
    %s59 = sadd.s32 %s58, 1
    %s60 = scalar_select %p57, %s58, %s59
    %p63 = pneg %p57
    %p64 = scmp.eq.s32.totalorder %s8, 1
    %p65 = por %p63, %p64
    %p66 = scmp.ne.s32.totalorder %s58, %s61
    %p67 = scmp.eq.s32.totalorder %s8, 0
    %p68 = por %p66, %p67
    %p69 = scmp.ne.s32.totalorder %s58, %s61
    %p70 = scmp.eq.s32.totalorder %s13, 1
    %p71 = por %p69, %p70
    %p72 = scmp.ne.s32.totalorder %s61, %s62
    %p73 = scmp.eq.s32.totalorder %s13, 0
    %p74 = por %p72, %p73
    %p75 = scmp.ne.s32.totalorder %s61, %s62
    %p76 = scmp.eq.s32.totalorder %s14, 1
    %p77 = por %p75, %p76
    %p79 = scmp.ne.s32.totalorder %s62, %s78
    %p80 = scmp.eq.s32.totalorder %s14, 0
    %p81 = por %p79, %p80
    %s82 = ssub.s32 %s15, %s27
    %s83 = ssub.s32 %s16, %s23
    %s84 = sor.u32 %s82, %s83
    %p85 = scmp.eq.s32.totalorder %s84, 0
    %s87 = sadd.s32 %s86, 1
    %s88 = scalar_select %p85, %s86, %s87
    %p91 = pneg %p85
    %p92 = scmp.eq.s32.totalorder %s8, 1
    %p93 = por %p91, %p92
    %p94 = scmp.ne.s32.totalorder %s86, %s89
    %p95 = scmp.eq.s32.totalorder %s8, 0
    %p96 = por %p94, %p95
    %p97 = scmp.ne.s32.totalorder %s86, %s89
    %p98 = scmp.eq.s32.totalorder %s13, 1
    %p99 = por %p97, %p98
    %p100 = scmp.ne.s32.totalorder %s89, %s90
    %p101 = scmp.eq.s32.totalorder %s13, 0
    %p102 = por %p100, %p101
    %p103 = scmp.ne.s32.totalorder %s89, %s90
    %p104 = scmp.eq.s32.totalorder %s14, 1
    %p105 = por %p103, %p104
    %p107 = scmp.ne.s32.totalorder %s90, %s106
    %p108 = scmp.eq.s32.totalorder %s14, 0
    %p109 = por %p107, %p108
    %p110 = scmp.le.s32.totalorder 1, %s8
    %p111 = scmp.lt.s32.totalorder %s8, 3
    %p112 = pnand %p110, %p111
    %p113 = pneg %p112
    // Predicated region
    $region9: #{blockdrop_forward.3} parent=5 // pred_check
      _
    $region10: #{blockdrop_forward.3} parent=5 // pred_check_branch
      %115 = sbr.rel (%p112) target = $region12
    $region11: #{blockdrop_forward.3} parent=5 // pred_region
      %s116 = ssub.s32 %s8, 1
    $region12: #{blockdrop_forward.3} parent=5 // pred_fallthru
      _
    %p117 = scmp.lt.s32.totalorder %s8, 2
    // Predicated region
    $region13: #{blockdrop_forward.3} parent=5 // pred_check
      %p118 = pneg %p117
    $region14: #{blockdrop_forward.3} parent=5 // pred_check_branch
      %120 = sbr.rel (%p118) target = $region16
    $region15: #{blockdrop_forward.3} parent=5 // pred_region
      // Predicated region
      $region17: #{blockdrop_forward.3} parent=15 // pred_check
        %p121 = pneg %p40
      $region18: #{blockdrop_forward.3} parent=15 // pred_check_branch
        %123 = sbr.rel (%p121) target = $region20
      $region19: #{blockdrop_forward.3} parent=15 // pred_region
        %p124 = scmp.lt.s32.totalorder %s15, 1
        %s125 = scalar_select %p124, %s15, 1
        %s126 = smul.addr %s125, 2
        %s127 = scalar_lea.vmem %s0, %s126
      $region20: #{blockdrop_forward.3} parent=15 // pred_fallthru
        _
      // Predicated region
      $region21: #{blockdrop_forward.3} parent=15 // pred_check
        %p128 = pneg %p68
      $region22: #{blockdrop_forward.3} parent=15 // pred_check_branch
        %130 = sbr.rel (%p128) target = $region24
      $region23: #{blockdrop_forward.3} parent=15 // pred_region
        %p131 = scmp.lt.s32.totalorder %s15, 1
        %s132 = scalar_select %p131, %s15, 1
        %p133 = scmp.lt.s32.totalorder %s16, 0
        %s134 = scalar_select %p133, %s16, 0
        %s135 = smul.addr %s134, 2
        %s136 = smul.addr %s132, 2
        %s137 = sadd.s32 %s135, %s136
        %s138 = smul.addr %s137, 4
        %s139 = scalar_lea.vmem %s1, %s138
      $region24: #{blockdrop_forward.3} parent=15 // pred_fallthru
        _
    $region16: #{blockdrop_forward.3} parent=5 // pred_fallthru
      _
    %p140 = scmp.le.s32.totalorder 1, %s8
    %p141 = scmp.lt.s32.totalorder %s8, 3
    %p142 = pnand %p140, %p141
    %p143 = pneg %p142
    // Predicated region
    $region25: #{blockdrop_forward.3} parent=5 // pred_check
      _
    $region26: #{blockdrop_forward.3} parent=5 // pred_check_branch
      %145 = sbr.rel (%p142) target = $region28
    $region27: #{blockdrop_forward.3} parent=5 // pred_region
      %s146 = ssub.s32 %s8, 1
      %p147 = scmp.lt.s32.totalorder %s17, 1
      %s148 = scalar_select %p147, %s17, 1
      %s149 = smul.addr %s148, 2
      %s150 = scalar_lea.vmem %s0, %s149
      %p151 = pneg %p46
      %p152 = pneg %p43
      %p153 = scmp.lt.s32.totalorder %s17, 1
      %s154 = scalar_select %p153, %s17, 1
      %p155 = scmp.lt.s32.totalorder %s18, 0
      %s156 = scalar_select %p155, %s18, 0
      %s157 = smul.addr %s156, 2
      %s158 = smul.addr %s154, 2
      %s159 = sadd.s32 %s157, %s158
      %s160 = smul.addr %s159, 4
      %s161 = scalar_lea.vmem %s1, %s160
      %p162 = pneg %p74
      %p163 = pneg %p71
      %p164 = pneg %p102
      %p165 = pneg %p99
      %p166 = scmp.lt.s32.totalorder %s17, 1
      %s167 = scalar_select %p166, %s17, 1
      %p168 = scmp.lt.s32.totalorder %s18, 0
      %s169 = scalar_select %p168, %s18, 0
      %s170 = smul.addr %s169, 2
      %s171 = smul.addr %s167, 2
      %s172 = sadd.s32 %s170, %s171
      %s173 = smul.addr %s172, 4
      %s174 = scalar_lea.vmem %s2, %s173
      %p175 = scmp.lt.s32.totalorder %s17, 1
      %s176 = scalar_select %p175, %s17, 1
      %s177 = smul.addr %s176, 2
      %s178 = scalar_lea.vmem %s0, %s177
      %p179 = scmp.lt.s32.totalorder %s17, 1
      %s180 = scalar_select %p179, %s17, 1
      %p181 = scmp.lt.s32.totalorder %s18, 0
      %s182 = scalar_select %p181, %s18, 0
      %s183 = smul.addr %s182, 2
      %s184 = smul.addr %s180, 2
      %s185 = sadd.s32 %s183, %s184
      %s186 = smul.addr %s185, 4
      %s187 = scalar_lea.vmem %s1, %s186
      %p188 = scmp.lt.s32.totalorder %s17, 1
      %s189 = scalar_select %p188, %s17, 1
      %p190 = scmp.lt.s32.totalorder %s18, 0
      %s191 = scalar_select %p190, %s18, 0
      %s192 = smul.addr %s191, 2
      %s193 = smul.addr %s189, 2
      %s194 = sadd.s32 %s192, %s193
      %s195 = smul.addr %s194, 4
      %s196 = scalar_lea.vmem %s2, %s195
      %v197 = vld [vmem:[%s187] sm:$0xff]
      %v198 = vld [vmem:[%s178] sm:$0x3]
      %v200 = vlaneseq
      %v201 = vshrl.u32 %v200, 7
      %v202 = vsub.s32 0, %v201
      %v203 = vrot.slane %v198, %v202
      %v204 = vlaneseq
      %v205 = vshrl.u32 %v204, 7
      %v206 = vsub.s32 1, %v205
      %v207 = vrot.slane %v198, %v206
      %v208 = vcombine.low %v203, %v207
      %v210 = vmul.f32 %v197, %v208
      %211 = vst [vmem:[%s196] sm:$0xff] %v210
      %p212 = scmp.lt.s32.totalorder %s17, 1
      %s213 = scalar_select %p212, %s17, 1
      %p214 = scmp.lt.s32.totalorder %s18, 0
      %s215 = scalar_select %p214, %s18, 0
      %s216 = smul.addr %s215, 2
      %s217 = smul.addr %s213, 2
      %s218 = sadd.s32 %s216, %s217
      %s219 = smul.addr %s218, 4
      %s220 = scalar_lea.vmem %s2, %s219
      // Predicated region
      $region29: #{blockdrop_forward.3} parent=27 // pred_check
        %p221 = pneg %p99
      $region30: #{blockdrop_forward.3} parent=27 // pred_check_branch
        %223 = sbr.rel (%p221) target = $region32
      $region31: #{blockdrop_forward.3} parent=27 // pred_region
        _
      $region32: #{blockdrop_forward.3} parent=27 // pred_fallthru
        _
    $region28: #{blockdrop_forward.3} parent=5 // pred_fallthru
      _
    %p224 = scmp.le.s32.totalorder 2, %s8
    // Predicated region
    $region33: #{blockdrop_forward.3} parent=5 // pred_check
      %p225 = pneg %p224
    $region34: #{blockdrop_forward.3} parent=5 // pred_check_branch
      %227 = sbr.rel (%p225) target = $region36
    $region35: #{blockdrop_forward.3} parent=5 // pred_region
      %s228 = ssub.s32 %s8, 2
      // Predicated region
      $region37: #{blockdrop_forward.3} parent=35 // pred_check
        %p229 = pneg %p105
      $region38: #{blockdrop_forward.3} parent=35 // pred_check_branch
        %231 = sbr.rel (%p229) target = $region40
      $region39: #{blockdrop_forward.3} parent=35 // pred_region
        %p232 = scmp.lt.s32.totalorder %s19, 1
        %s233 = scalar_select %p232, %s19, 1
        %p234 = scmp.lt.s32.totalorder %s20, 0
        %s235 = scalar_select %p234, %s20, 0
        %s236 = smul.addr %s235, 2
        %s237 = smul.addr %s233, 2
        %s238 = sadd.s32 %s236, %s237
        %s239 = smul.addr %s238, 4
        %s240 = scalar_lea.vmem %s2, %s239
      $region40: #{blockdrop_forward.3} parent=35 // pred_fallthru
        _
    $region36: #{blockdrop_forward.3} parent=5 // pred_fallthru
      _
  $region6: #{blockdrop_forward.3} parent=0 // loop_footer
    %s12 = sadd.s32 1, %s8
  $region7: #{blockdrop_forward.3} parent=0 // loop_footer_branch
    %7 = sbr.rel target = $region3
  $region8: #{blockdrop_forward.3} parent=0 // loop_exit
    _

// kernel: blockdrop_forward.2
$region0: #{blockdrop_forward.2}
  #allocation0 [shape = 'u32[]', space=smem, size = 0x4, offset = 0x4, fixed_abs, tag = 'smem constant byte address 0x4 - core index']
  #allocation1 [shape = 'u32[144,128]{1,0:T(1,128)}', space=vmem, size = 0x12000, scoped, tag = 'internal scratch']
  %s0 = inlined_call_operand.vmem [shape: f32[2,256], index: 0, kind: input, shape index: {}]
  %s1 = inlined_call_operand.vmem [shape: f32[2,256], index: 1, kind: output, shape index: {}]
  %s2 = sld [smem:[#allocation0]]
  $region14: #{blockdrop_forward.2} parent=0
    _
  %s4 = ssub.s32 1, %s2
  %s5 = scalar_select 0, %s4, %s2
  // Predicated region
  $region2: #{blockdrop_forward.2} parent=0 // pred_check
    _
  $region3: #{blockdrop_forward.2} parent=0 // pred_check_branch
    %7 = sbr.rel (0) target = $region5
  $region4: #{blockdrop_forward.2} parent=0 // pred_region
    _
  $region5: #{blockdrop_forward.2} parent=0 // pred_fallthru
    _
  %v8 = vld [vmem:[%s0] sm:$0xf]
  %v11 = vunpack.c.l.s4 1983009808
  %v12 = vunpack.c.0.s8 %v11
  %v13 = vlaneseq
  %v14 = vshrl.u32 %v13, 7
  %v15 = vsub.s32 %v12, %v14
  %v16 = vrot.slane %v8, %v15
  %v17 = vcombine.high %v16, %v16
  %18 = vrot.lane.b32.xlu0 %v16, 112
  %v19 = vpop.permute.xlu0 %18
  %20 = vrot.lane.b32.xlu0 %v17, 112
  %v21 = vpop.permute.xlu0 %20
  %vm22 = vcmask 916480
  %v23 = vsel %vm22, %v19, %v21
  %v25 = vsel %vm22, %v21, 0.0
  %v27 = vcombine.low %v23, %v25
  %v29 = vunpack.c.l.s4 1983009808
  %v30 = vunpack.c.0.s8 %v29
  %v31 = vlaneseq
  %v32 = vshrl.u32 %v31, 7
  %v33 = vsub.s32 %v30, %v32
  %v34 = vrot.slane %v27, %v33
  %v36 = vmax.f32 %v8, %v34
  %37 = vrot.lane.b32.xlu0 %v16, 16
  %v38 = vpop.permute.xlu0 %37
  %39 = vrot.lane.b32.xlu0 %v17, 16
  %v40 = vpop.permute.xlu0 %39
  %vm41 = vcmask 130048
  %v42 = vsel %vm41, %v38, %v40
  %v44 = vsel %vm41, 0.0, %v38
  %v46 = vcombine.low %v44, %v42
  %v48 = vunpack.c.l.s4 1983009808
  %v49 = vunpack.c.0.s8 %v48
  %v50 = vlaneseq
  %v51 = vshrl.u32 %v50, 7
  %v52 = vsub.s32 %v49, %v51
  %v53 = vrot.slane %v46, %v52
  %v55 = vmax.f32 %v36, %v53
  %56 = vrot.lane.b32.xlu0 %v16, 96
  %v57 = vpop.permute.xlu0 %56
  %58 = vrot.lane.b32.xlu0 %v17, 96
  %v59 = vpop.permute.xlu0 %58
  %vm60 = vcmask 785408
  %v61 = vsel %vm60, %v57, %v59
  %v63 = vsel %vm60, %v59, 0.0
  %v65 = vcombine.low %v61, %v63
  %v67 = vunpack.c.l.s4 1983009808
  %v68 = vunpack.c.0.s8 %v67
  %v69 = vlaneseq
  %v70 = vshrl.u32 %v69, 7
  %v71 = vsub.s32 %v68, %v70
  %v72 = vrot.slane %v65, %v71
  %v74 = vmax.f32 %v55, %v72
  %75 = vrot.lane.b32.xlu0 %v16, 32
  %v76 = vpop.permute.xlu0 %75
  %77 = vrot.lane.b32.xlu0 %v17, 32
  %v78 = vpop.permute.xlu0 %77
  %vm79 = vcmask 261120
  %v80 = vsel %vm79, %v76, %v78
  %v82 = vsel %vm79, 0.0, %v76
  %v84 = vcombine.low %v82, %v80
  %v86 = vunpack.c.l.s4 1983009808
  %v87 = vunpack.c.0.s8 %v86
  %v88 = vlaneseq
  %v89 = vshrl.u32 %v88, 7
  %v90 = vsub.s32 %v87, %v89
  %v91 = vrot.slane %v84, %v90
  %v93 = vmax.f32 %v74, %v91
  %94 = vrot.lane.b32.xlu0 %v16, 80
  %v95 = vpop.permute.xlu0 %94
  %96 = vrot.lane.b32.xlu0 %v17, 80
  %v97 = vpop.permute.xlu0 %96
  %vm98 = vcmask 654336
  %v99 = vsel %vm98, %v95, %v97
  %v101 = vsel %vm98, %v97, 0.0
  %v103 = vcombine.low %v99, %v101
  %v105 = vunpack.c.l.s4 1983009808
  %v106 = vunpack.c.0.s8 %v105
  %v107 = vlaneseq
  %v108 = vshrl.u32 %v107, 7
  %v109 = vsub.s32 %v106, %v108
  %v110 = vrot.slane %v103, %v109
  %v112 = vmax.f32 %v93, %v110
  %113 = vrot.lane.b32.xlu0 %v16, 48
  %v114 = vpop.permute.xlu0 %113
  %115 = vrot.lane.b32.xlu0 %v17, 48
  %v116 = vpop.permute.xlu0 %115
  %vm117 = vcmask 392192
  %v118 = vsel %vm117, %v114, %v116
  %v120 = vsel %vm117, 0.0, %v114
  %v122 = vcombine.low %v120, %v118
  %v124 = vunpack.c.l.s4 1983009808
  %v125 = vunpack.c.0.s8 %v124
  %v126 = vlaneseq
  %v127 = vshrl.u32 %v126, 7
  %v128 = vsub.s32 %v125, %v127
  %v129 = vrot.slane %v122, %v128
  %v131 = vmax.f32 %v112, %v129
  %v132 = vlaneseq
  %v133 = vand.u32 %v132, 127
  %v134 = vadd.s32 %v133, 128
  %v135 = vand.u32 %v133, 15
  %v136 = vand.u32 %v134, 15
  %v137 = vadd.s32 %v135, 4294967293
  %v138 = vadd.s32 %v136, 4294967293
  %vm139 = vcmp.ge.s32.totalorder %v137, 0
  %vm140 = vcmp.ge.s32.totalorder %v138, 0
  %vm141 = vcmp.lt.s32.totalorder %v137, 16
  %vm142 = vcmp.lt.s32.totalorder %v138, 16
  %vm143 = vmand %vm139, %vm141
  %vm144 = vmand %vm140, %vm142
  %v147 = vunpack.c.l.s4 1983009808
  %v148 = vunpack.c.0.s8 %v147
  %v149 = vlaneseq
  %v150 = vshrl.u32 %v149, 7
  %v151 = vsub.s32 %v148, %v150
  %v152 = vrot.slane %v131, %v151
  %v153 = vcombine.high %v152, %v152
  %154 = vrot.lane.b32.xlu0 %v152, 3
  %v155 = vpop.permute.xlu0 %154
  %156 = vrot.lane.b32.xlu0 %v153, 3
  %v157 = vpop.permute.xlu0 %156
  %vm158 = vcmask 23552
  %v159 = vsel %vm158, %v155, %v157
  %v162 = vsel %vm158, 0.0, %v155
  %v163 = vsel %vm143, %v162, 0.0
  %v164 = vsel %vm144, %v159, 0.0
  %v167 = vcombine.low %v163, %v164
  %v169 = vunpack.c.l.s4 1983009808
  %v170 = vunpack.c.0.s8 %v169
  %v171 = vlaneseq
  %v172 = vshrl.u32 %v171, 7
  %v173 = vsub.s32 %v170, %v172
  %v174 = vrot.slane %v167, %v173
  %v176 = vmax.f32 %v131, %v174
  %v177 = vadd.s32 %v135, 4294967294
  %v178 = vadd.s32 %v136, 4294967294
  %vm179 = vcmp.ge.s32.totalorder %v177, 0
  %vm180 = vcmp.ge.s32.totalorder %v178, 0
  %vm181 = vcmp.lt.s32.totalorder %v177, 16
  %vm182 = vcmp.lt.s32.totalorder %v178, 16
  %vm183 = vmand %vm179, %vm181
  %vm184 = vmand %vm180, %vm182
  %185 = vrot.lane.b32.xlu0 %v152, 2
  %v186 = vpop.permute.xlu0 %185
  %187 = vrot.lane.b32.xlu0 %v153, 2
  %v188 = vpop.permute.xlu0 %187
  %vm189 = vcmask 15360
  %v190 = vsel %vm189, %v186, %v188
  %v193 = vsel %vm189, 0.0, %v186
  %v194 = vsel %vm183, %v193, 0.0
  %v195 = vsel %vm184, %v190, 0.0
  %v198 = vcombine.low %v194, %v195
  %v200 = vunpack.c.l.s4 1983009808
  %v201 = vunpack.c.0.s8 %v200
  %v202 = vlaneseq
  %v203 = vshrl.u32 %v202, 7
  %v204 = vsub.s32 %v201, %v203
  %v205 = vrot.slane %v198, %v204
  %v207 = vmax.f32 %v176, %v205
  %v208 = vadd.s32 %v135, 4294967295
  %v209 = vadd.s32 %v136, 4294967295
  %vm210 = vcmp.ge.s32.totalorder %v208, 0
  %vm211 = vcmp.ge.s32.totalorder %v209, 0
  %vm212 = vcmp.lt.s32.totalorder %v208, 16
  %vm213 = vcmp.lt.s32.totalorder %v209, 16
  %vm214 = vmand %vm210, %vm212
  %vm215 = vmand %vm211, %vm213
  %216 = vrot.lane.b32.xlu0 %v152, 1
  %v217 = vpop.permute.xlu0 %216
  %218 = vrot.lane.b32.xlu0 %v153, 1
  %v219 = vpop.permute.xlu0 %218
  %vm220 = vcmask 7168
  %v221 = vsel %vm220, %v217, %v219
  %v224 = vsel %vm220, 0.0, %v217
  %v225 = vsel %vm214, %v224, 0.0
  %v226 = vsel %vm215, %v221, 0.0
  %v229 = vcombine.low %v225, %v226
  %v231 = vunpack.c.l.s4 1983009808
  %v232 = vunpack.c.0.s8 %v231
  %v233 = vlaneseq
  %v234 = vshrl.u32 %v233, 7
  %v235 = vsub.s32 %v232, %v234
  %v236 = vrot.slane %v229, %v235
  %v238 = vmax.f32 %v207, %v236
  %v239 = vadd.s32 %v135, 1
  %v240 = vadd.s32 %v136, 1
  %vm241 = vcmp.ge.s32.totalorder %v239, 0
  %vm242 = vcmp.ge.s32.totalorder %v240, 0
  %vm243 = vcmp.lt.s32.totalorder %v239, 16
  %vm244 = vcmp.lt.s32.totalorder %v240, 16
  %vm245 = vmand %vm241, %vm243
  %vm246 = vmand %vm242, %vm244
  %247 = vrot.lane.b32.xlu0 %v152, 127
  %v248 = vpop.permute.xlu0 %247
  %249 = vrot.lane.b32.xlu0 %v153, 127
  %v250 = vpop.permute.xlu0 %249
  %vm251 = vcmask 1039360
  %v252 = vsel %vm251, %v248, %v250
  %v255 = vsel %vm251, %v250, 0.0
  %v256 = vsel %vm245, %v252, 0.0
  %v257 = vsel %vm246, %v255, 0.0
  %v260 = vcombine.low %v256, %v257
  %v262 = vunpack.c.l.s4 1983009808
  %v263 = vunpack.c.0.s8 %v262
  %v264 = vlaneseq
  %v265 = vshrl.u32 %v264, 7
  %v266 = vsub.s32 %v263, %v265
  %v267 = vrot.slane %v260, %v266
  %v269 = vmax.f32 %v238, %v267
  %v270 = vadd.s32 %v135, 2
  %v271 = vadd.s32 %v136, 2
  %vm272 = vcmp.ge.s32.totalorder %v270, 0
  %vm273 = vcmp.ge.s32.totalorder %v271, 0
  %vm274 = vcmp.lt.s32.totalorder %v270, 16
  %vm275 = vcmp.lt.s32.totalorder %v271, 16
  %vm276 = vmand %vm272, %vm274
  %vm277 = vmand %vm273, %vm275
  %278 = vrot.lane.b32.xlu0 %v152, 126
  %v279 = vpop.permute.xlu0 %278
  %280 = vrot.lane.b32.xlu0 %v153, 126
  %v281 = vpop.permute.xlu0 %280
  %vm282 = vcmask 1031168
  %v283 = vsel %vm282, %v279, %v281
  %v286 = vsel %vm282, %v281, 0.0
  %v287 = vsel %vm276, %v283, 0.0
  %v288 = vsel %vm277, %v286, 0.0
  %v291 = vcombine.low %v287, %v288
  %v293 = vunpack.c.l.s4 1983009808
  %v294 = vunpack.c.0.s8 %v293
  %v295 = vlaneseq
  %v296 = vshrl.u32 %v295, 7
  %v297 = vsub.s32 %v294, %v296
  %v298 = vrot.slane %v291, %v297
  %v300 = vmax.f32 %v269, %v298
  %v301 = vadd.s32 %v135, 3
  %v302 = vadd.s32 %v136, 3
  %vm303 = vcmp.ge.s32.totalorder %v301, 0
  %vm304 = vcmp.ge.s32.totalorder %v302, 0
  %vm305 = vcmp.lt.s32.totalorder %v301, 16
  %vm306 = vcmp.lt.s32.totalorder %v302, 16
  %vm307 = vmand %vm303, %vm305
  %vm308 = vmand %vm304, %vm306
  %309 = vrot.lane.b32.xlu0 %v152, 125
  %v310 = vpop.permute.xlu0 %309
  %311 = vrot.lane.b32.xlu0 %v153, 125
  %v312 = vpop.permute.xlu0 %311
  %vm313 = vcmask 1022976
  %v314 = vsel %vm313, %v310, %v312
  %v317 = vsel %vm313, %v312, 0.0
  %v318 = vsel %vm307, %v314, 0.0
  %v319 = vsel %vm308, %v317, 0.0
  %v322 = vcombine.low %v318, %v319
  %v324 = vunpack.c.l.s4 1983009808
  %v325 = vunpack.c.0.s8 %v324
  %v326 = vlaneseq
  %v327 = vshrl.u32 %v326, 7
  %v328 = vsub.s32 %v325, %v327
  %v329 = vrot.slane %v322, %v328
  %v331 = vmax.f32 %v300, %v329
  %v332 = vsub.f32 1.0, %v331
  %v335 = vunpack.c.l.s4 1983009808
  %v336 = vunpack.c.0.s8 %v335
  %v337 = vlaneseq
  %v338 = vshrl.u32 %v337, 7
  %v339 = vsub.s32 %v336, %v338
  %v340 = vrot.slane %v332, %v339
  %v341 = vcombine.high %v340, %v340
  %vm344 = vcmask 1041408
  %v345 = vsel %vm344, %v340, 0.0
  %v346 = vsel %vm344, %v341, 0.0
  %v347 = vadd.f32 %v345, %v346
  %348 = vadd.xlane.f32.xlu0 %v347
  %v349 = vpop.xlane.xlu0 %348
  %v350 = vrot.slane %v349, 4
  %v351 = vadd.f32 %v349, %v350
  %v352 = vrot.slane %v351, 2
  %v353 = vadd.f32 %v351, %v352
  %v354 = vrot.slane %v353, 1
  %v355 = vadd.f32 %v353, %v354
  %s356 = vtos %v355
  %v357 = vstv %s356
  %v358 = vrcp.pop %v357
  %s359 = vtos %v358
  %s360 = smul.f32 512.0, %s359
  %v361 = vstv %s360
  %v362 = vmul.f32 %v332, %v361
  %363 = vst [vmem:[%s1] sm:$0xf] %v362
  // Predicated region
  $region6: #{blockdrop_forward.2} parent=0 // pred_check
    _
  $region7: #{blockdrop_forward.2} parent=0 // pred_check_branch
    %365 = sbr.rel (0) target = $region9
  $region8: #{blockdrop_forward.2} parent=0 // pred_region
    _
  $region9: #{blockdrop_forward.2} parent=0 // pred_fallthru
    _
  // Predicated region
  $region10: #{blockdrop_forward.2} parent=0 // pred_check
    _
  $region11: #{blockdrop_forward.2} parent=0 // pred_check_branch
    %367 = sbr.rel (0) target = $region13
  $region12: #{blockdrop_forward.2} parent=0 // pred_region
    _
  $region13: #{blockdrop_forward.2} parent=0 // pred_fallthru
    _

</llo_original>
